<compile_context>
chip_gen: v6e
topology: v6e:2x2x1
jax: 0.10.0
libtpu: 0.0.40
codegen_flags: <defaults>
</compile_context>

<pallas_src>
import numpy as np
import jax
import jax.numpy as jnp
from jax.experimental import pallas as pl
from jax.experimental.pallas import tpu as pltpu

# ---- config (small, consistent with the module) -----------------------------
B = 2            # batch
S = 8            # input sequence length (input_ids)
SP = S + 1       # sequence length after CLS prepend
T = B * SP       # total token rows, flattened over batch
W = 32           # word_dim
H = 32           # hidden_size
V = 127          # vocab_size of the external word embedding
VP = V + 1       # rows of the combined [cls; vocab] table (= 128, lane-aligned)
P = 16           # max_position_embeddings (>= SP)
LN_EPS = 1e-12   # layer_norm_eps


# ---- the Pallas kernel: whole BertEmbeddings forward in one step -------------
def bert_embeddings_kernel(
    ids_ref,      # (T, 1) int32 : 0 -> CLS row, k+1 -> vocab row k
    table_ref,    # (VP, W)      : [cls ; word_embeddings.weight]
    pos_ref,      # (SP, W)      : position_embeddings rows 0..S
    type_ref,     # (2, W)       : token_type_embeddings
    wt_ref,       # (W, H)       : input_trans weight, pre-transposed (in, out)
    bt_ref,       # (1, H)       : input_trans bias
    g_ref,        # (1, H)       : LayerNorm gamma
    beta_ref,     # (1, H)       : LayerNorm beta
    out_ref,      # (T, H)
):
    ids = ids_ref[...]                                                 # (T, 1) int32

    # --- word embedding gather + CLS concat, fused as one one-hot MXU matmul ---
    word_oh = (jax.lax.broadcasted_iota(jnp.int32, (T, VP), 1) == ids).astype(jnp.float32)
    emb = jnp.dot(word_oh, table_ref[...], preferred_element_type=jnp.float32)   # (T, W)

    # --- absolute position embeddings (same rows for every batch element) ------
    row = jax.lax.broadcasted_iota(jnp.int32, (T, 1), 0)
    seq_pos = row
    for _ in range(B - 1):                    # static unroll: seq_pos = row mod (S+1)
        seq_pos = jnp.where(seq_pos >= SP, seq_pos - SP, seq_pos)
    pos_oh = (jax.lax.broadcasted_iota(jnp.int32, (T, SP), 1) == seq_pos).astype(jnp.float32)
    emb = emb + jnp.dot(pos_oh, pos_ref[...], preferred_element_type=jnp.float32)

    # --- token-type embeddings: type 0 for CLS rows (id == 0), type 1 otherwise -
    emb = emb + jnp.where(ids == 0, type_ref[0:1, :], type_ref[1:2, :])

    # --- input_trans: Linear(word_dim -> hidden_size) ---------------------------
    h = jnp.dot(emb, wt_ref[...], preferred_element_type=jnp.float32) + bt_ref[...]

    # --- LayerNorm over hidden (rsqrt -> EUP); dropout is identity in eval ------
    mean = jnp.mean(h, axis=-1, keepdims=True)
    hc = h - mean
    var = jnp.mean(hc * hc, axis=-1, keepdims=True)
    out_ref[...] = hc * jax.lax.rsqrt(var + LN_EPS) * g_ref[...] + beta_ref[...]


# ---- wrapper -----------------------------------------------------------------
def bert_embeddings(input_ids, params):
    """input_ids: (B, S) int32; params: dict (Linear weight already (in, out))."""
    # Index prep (mirrors the module building position_ids / token_type_ids / cat):
    #   row 0 of each sequence -> CLS row (id 0) of the combined table, else id+1.
    ids_full = jnp.concatenate(
        [jnp.zeros((B, 1), jnp.int32), input_ids.astype(jnp.int32) + 1], axis=1
    ).reshape(T, 1)
    pos_slice = jax.lax.slice(params["pos_table"], (0, 0), (SP, W))   # position_ids[:, :S+1]

    full = lambda shape: pl.BlockSpec(shape, lambda i, _s=shape: (0,) * len(_s))

    out2d = pl.pallas_call(
        bert_embeddings_kernel,
        out_shape=jax.ShapeDtypeStruct((T, H), jnp.float32),
        grid=(1,),
        in_specs=[
            full((T, 1)),                    # gather ids
            full((VP, W)),                   # [cls ; word] table
            full((SP, W)),                   # position rows 0..S
            full((2, W)),                    # token-type table
            full((W, H)), full((1, H)),      # input_trans
            full((1, H)), full((1, H)),      # LayerNorm gamma / beta
        ],
        out_specs=full((T, H)),
        compiler_params=pltpu.CompilerParams(dimension_semantics=("arbitrary",)),
    )(
        ids_full,
        params["emb_table"], pos_slice, params["type_table"],
        params["wt"], params["bt"],
        params["gamma"], params["beta"],
    )
    return out2d.reshape(B, SP, H)


# ---- pure-JAX reference (follows the torch forward exactly) --------------------
def bert_embeddings_ref(input_ids, p):
    word = p["word_table"][input_ids]                           # (B, S, W)
    cls = jnp.broadcast_to(p["cls"][None], (B, 1, W))
    inputs_embeds = jnp.concatenate([cls, word], axis=1)        # (B, S+1, W)
    token_type_ids = jnp.concatenate(
        [jnp.zeros((B, 1), jnp.int32), jnp.ones((B, S), jnp.int32)], axis=1)
    emb = inputs_embeds + p["type_table"][token_type_ids]
    emb = emb + p["pos_table"][:SP][None]
    emb = emb @ p["wt"] + p["bt"]                               # input_trans
    m = jnp.mean(emb, axis=-1, keepdims=True)
    v = jnp.mean((emb - m) ** 2, axis=-1, keepdims=True)
    return (emb - m) / jnp.sqrt(v + LN_EPS) * p["gamma"] + p["beta"]


# ---- main ----------------------------------------------------------------------
if __name__ == "__main__":
    key = jax.random.PRNGKey(0)
    k_ids, k_word, k_cls, k_pos, k_type, k_wt, k_bt = jax.random.split(key, 7)

    word_table = jax.random.normal(k_word, (V, W), jnp.float32) * 0.05
    cls = jax.random.uniform(k_cls, (1, W), jnp.float32)        # nn.Parameter(torch.rand(1, word_dim))

    params = {
        "word_table": word_table,
        "cls": cls,
        # combined [cls ; vocab] table built once at parameter-prep time (128 rows, lane-aligned)
        "emb_table": jnp.concatenate([cls, word_table], axis=0),
        "pos_table": jax.random.normal(k_pos, (P, W), jnp.float32) * 0.05,
        "type_table": jax.random.normal(k_type, (2, W), jnp.float32) * 0.05,
        # nn.Linear stores (out, in); kernel takes pre-transposed (in, out)
        "wt": jax.random.normal(k_wt, (W, H), jnp.float32) * 0.05,
        "bt": jax.random.normal(k_bt, (1, H), jnp.float32) * 0.05,
        "gamma": jnp.ones((1, H), jnp.float32),
        "beta": jnp.zeros((1, H), jnp.float32),
    }

    input_ids = jax.random.randint(k_ids, (B, S), 0, V, dtype=jnp.int32)

    out = jax.block_until_ready(bert_embeddings(input_ids, params))
    ref = jax.block_until_ready(bert_embeddings_ref(input_ids, params))

    assert out.shape == (B, SP, H)
    np.testing.assert_allclose(np.asarray(out), np.asarray(ref), rtol=1e-4, atol=1e-4)
    print("KERNEL_OK")
</pallas_src>

<mosaic_0001>
module attributes {stable_mosaic.version = 11 : i64} {
  func.func @bert_embeddings_kernel(%arg0: i32, %arg1: memref<18x1xi32, #tpu.memory_space<vmem>>, %arg2: memref<128x32xf32, #tpu.memory_space<vmem>>, %arg3: memref<9x32xf32, #tpu.memory_space<vmem>>, %arg4: memref<2x32xf32, #tpu.memory_space<vmem>>, %arg5: memref<32x32xf32, #tpu.memory_space<vmem>>, %arg6: memref<1x32xf32, #tpu.memory_space<vmem>>, %arg7: memref<1x32xf32, #tpu.memory_space<vmem>>, %arg8: memref<1x32xf32, #tpu.memory_space<vmem>>, %arg9: memref<18x32xf32, #tpu.memory_space<vmem>>) attributes {dimension_semantics = [#tpu.dimension_semantics<arbitrary>], iteration_bounds = array<i64: 1>, scalar_prefetch = 0 : i64, scratch_operands = 0 : i64, tpu.core_type = #tpu.core_type<tc>, window_params = [{pipeline_mode = #tpu.pipeline_mode<synchronous>, transform_indices = @transform_0, window_bounds = array<i64: 18, 1>}, {pipeline_mode = #tpu.pipeline_mode<synchronous>, transform_indices = @transform_1, window_bounds = array<i64: 128, 32>}, {pipeline_mode = #tpu.pipeline_mode<synchronous>, transform_indices = @transform_2, window_bounds = array<i64: 9, 32>}, {pipeline_mode = #tpu.pipeline_mode<synchronous>, transform_indices = @transform_3, window_bounds = array<i64: 2, 32>}, {pipeline_mode = #tpu.pipeline_mode<synchronous>, transform_indices = @transform_4, window_bounds = array<i64: 32, 32>}, {pipeline_mode = #tpu.pipeline_mode<synchronous>, transform_indices = @transform_5, window_bounds = array<i64: 1, 32>}, {pipeline_mode = #tpu.pipeline_mode<synchronous>, transform_indices = @transform_6, window_bounds = array<i64: 1, 32>}, {pipeline_mode = #tpu.pipeline_mode<synchronous>, transform_indices = @transform_7, window_bounds = array<i64: 1, 32>}, {pipeline_mode = #tpu.pipeline_mode<synchronous>, transform_indices = @transform_8, window_bounds = array<i64: 18, 32>}]} {
    %c0 = arith.constant 0 : index
    %c0_0 = arith.constant 0 : index
    %0 = vector.load %arg1[%c0, %c0_0] : memref<18x1xi32, #tpu.memory_space<vmem>>, vector<18x1xi32>
    %1 = tpu.iota {dimensions = array<i32: 1>} : vector<18x128xi32>
    %2 = vector.broadcast %0 : vector<18x1xi32> to vector<18x128xi32>
    %3 = arith.cmpi eq, %1, %2 : vector<18x128xi32>
    %4 = arith.extui %3 : vector<18x128xi1> to vector<18x128xi32>
    %5 = arith.sitofp %4 : vector<18x128xi32> to vector<18x128xf32>
    %c0_1 = arith.constant 0 : index
    %c0_2 = arith.constant 0 : index
    %6 = vector.load %arg2[%c0_1, %c0_2] : memref<128x32xf32, #tpu.memory_space<vmem>>, vector<128x32xf32>
    %cst = arith.constant dense<0.000000e+00> : vector<18x32xf32>
    %7 = tpu.matmul %5, %6, %cst {dimension_numbers = #tpu.dot_dimension_numbers<[1], [0], [0], [1], [0, 0, 1, 1], [], []>} : vector<18x128xf32>, vector<128x32xf32>, vector<18x32xf32> -> vector<18x32xf32>
    %8 = tpu.iota {dimensions = array<i32: 0>} : vector<18x1xi32>
    %c9_i32 = arith.constant 9 : i32
    %9 = vector.broadcast %c9_i32 : i32 to vector<18x1xi32>
    %10 = arith.cmpi sge, %8, %9 : vector<18x1xi32>
    %c9_i32_3 = arith.constant 9 : i32
    %11 = vector.broadcast %c9_i32_3 : i32 to vector<18x1xi32>
    %12 = arith.subi %8, %11 : vector<18x1xi32>
    %13 = arith.select %10, %12, %8 : vector<18x1xi1>, vector<18x1xi32>
    %14 = tpu.iota {dimensions = array<i32: 1>} : vector<18x9xi32>
    %15 = vector.broadcast %13 : vector<18x1xi32> to vector<18x9xi32>
    %16 = arith.cmpi eq, %14, %15 : vector<18x9xi32>
    %17 = arith.extui %16 : vector<18x9xi1> to vector<18x9xi32>
    %18 = arith.sitofp %17 : vector<18x9xi32> to vector<18x9xf32>
    %c0_4 = arith.constant 0 : index
    %c0_5 = arith.constant 0 : index
    %19 = vector.load %arg3[%c0_4, %c0_5] : memref<9x32xf32, #tpu.memory_space<vmem>>, vector<9x32xf32>
    %cst_6 = arith.constant dense<0.000000e+00> : vector<18x32xf32>
    %20 = tpu.matmul %18, %19, %cst_6 {dimension_numbers = #tpu.dot_dimension_numbers<[1], [0], [0], [1], [0, 0, 1, 1], [], []>} : vector<18x9xf32>, vector<9x32xf32>, vector<18x32xf32> -> vector<18x32xf32>
    %21 = arith.addf %7, %20 : vector<18x32xf32>
    %c0_i32 = arith.constant 0 : i32
    %22 = vector.broadcast %c0_i32 : i32 to vector<18x1xi32>
    %23 = arith.cmpi eq, %0, %22 : vector<18x1xi32>
    %c0_7 = arith.constant 0 : index
    %c0_8 = arith.constant 0 : index
    %24 = vector.load %arg4[%c0_7, %c0_8] : memref<2x32xf32, #tpu.memory_space<vmem>>, vector<1x32xf32>
    %c1 = arith.constant 1 : index
    %c0_9 = arith.constant 0 : index
    %25 = vector.load %arg4[%c1, %c0_9] : memref<2x32xf32, #tpu.memory_space<vmem>>, vector<1x32xf32>
    %26 = vector.shape_cast %23 : vector<18x1xi1> to vector<18x1xi1>
    %27 = vector.broadcast %26 : vector<18x1xi1> to vector<18x32xi1>
    %28 = vector.shape_cast %24 : vector<1x32xf32> to vector<1x32xf32>
    %29 = vector.broadcast %28 : vector<1x32xf32> to vector<18x32xf32>
    %30 = vector.shape_cast %25 : vector<1x32xf32> to vector<1x32xf32>
    %31 = vector.broadcast %30 : vector<1x32xf32> to vector<18x32xf32>
    %32 = arith.select %27, %29, %31 : vector<18x32xi1>, vector<18x32xf32>
    %33 = arith.addf %21, %32 : vector<18x32xf32>
    %c0_10 = arith.constant 0 : index
    %c0_11 = arith.constant 0 : index
    %34 = vector.load %arg5[%c0_10, %c0_11] : memref<32x32xf32, #tpu.memory_space<vmem>>, vector<32x32xf32>
    %cst_12 = arith.constant dense<0.000000e+00> : vector<18x32xf32>
    %35 = tpu.matmul %33, %34, %cst_12 {dimension_numbers = #tpu.dot_dimension_numbers<[1], [0], [0], [1], [0, 0, 1, 1], [], []>} : vector<18x32xf32>, vector<32x32xf32>, vector<18x32xf32> -> vector<18x32xf32>
    %c0_13 = arith.constant 0 : index
    %c0_14 = arith.constant 0 : index
    %36 = vector.load %arg6[%c0_13, %c0_14] : memref<1x32xf32, #tpu.memory_space<vmem>>, vector<1x32xf32>
    %37 = vector.broadcast %36 : vector<1x32xf32> to vector<18x32xf32>
    %38 = arith.addf %35, %37 : vector<18x32xf32>
    %cst_15 = arith.constant dense<0.000000e+00> : vector<18xf32>
    %39 = vector.multi_reduction <add>, %38, %cst_15 [1] : vector<18x32xf32> to vector<18xf32>
    %40 = vector.shape_cast %39 : vector<18xf32> to vector<18x1xf32>
    %cst_16 = arith.constant 3.200000e+01 : f32
    %41 = vector.broadcast %cst_16 : f32 to vector<18x1xf32>
    %42 = arith.divf %40, %41 : vector<18x1xf32>
    %43 = vector.broadcast %42 : vector<18x1xf32> to vector<18x32xf32>
    %44 = arith.subf %38, %43 : vector<18x32xf32>
    %45 = arith.mulf %44, %44 : vector<18x32xf32>
    %cst_17 = arith.constant dense<0.000000e+00> : vector<18xf32>
    %46 = vector.multi_reduction <add>, %45, %cst_17 [1] : vector<18x32xf32> to vector<18xf32>
    %47 = vector.shape_cast %46 : vector<18xf32> to vector<18x1xf32>
    %cst_18 = arith.constant 3.200000e+01 : f32
    %48 = vector.broadcast %cst_18 : f32 to vector<18x1xf32>
    %49 = arith.divf %47, %48 : vector<18x1xf32>
    %cst_19 = arith.constant 9.99999996E-13 : f32
    %50 = vector.broadcast %cst_19 : f32 to vector<18x1xf32>
    %51 = arith.addf %49, %50 : vector<18x1xf32>
    %52 = math.rsqrt %51 : vector<18x1xf32>
    %53 = vector.broadcast %52 : vector<18x1xf32> to vector<18x32xf32>
    %54 = arith.mulf %44, %53 : vector<18x32xf32>
    %c0_20 = arith.constant 0 : index
    %c0_21 = arith.constant 0 : index
    %55 = vector.load %arg7[%c0_20, %c0_21] : memref<1x32xf32, #tpu.memory_space<vmem>>, vector<1x32xf32>
    %56 = vector.broadcast %55 : vector<1x32xf32> to vector<18x32xf32>
    %57 = arith.mulf %54, %56 : vector<18x32xf32>
    %c0_22 = arith.constant 0 : index
    %c0_23 = arith.constant 0 : index
    %58 = vector.load %arg8[%c0_22, %c0_23] : memref<1x32xf32, #tpu.memory_space<vmem>>, vector<1x32xf32>
    %59 = vector.broadcast %58 : vector<1x32xf32> to vector<18x32xf32>
    %60 = arith.addf %57, %59 : vector<18x32xf32>
    %c0_24 = arith.constant 0 : index
    %c0_25 = arith.constant 0 : index
    %61 = vector.load %arg9[%c0_24, %c0_25] : memref<18x32xf32, #tpu.memory_space<vmem>>, vector<18x32xf32>
    tpu.vector_store %arg9[%c0_24, %c0_25], %60 {strides = array<i32>} : memref<18x32xf32, #tpu.memory_space<vmem>>, vector<18x32xf32>,
    return
  }
  func.func @transform_0(%arg0: i32) -> (i32, i32) {
    %c0_i32 = arith.constant 0 : i32
    %c0_i32_0 = arith.constant 0 : i32
    %c0_i32_1 = arith.constant 0 : i32
    return %c0_i32, %c0_i32_0 : i32, i32
  }
  func.func @transform_1(%arg0: i32) -> (i32, i32) {
    %c0_i32 = arith.constant 0 : i32
    %c0_i32_0 = arith.constant 0 : i32
    %c0_i32_1 = arith.constant 0 : i32
    return %c0_i32, %c0_i32_0 : i32, i32
  }
  func.func @transform_2(%arg0: i32) -> (i32, i32) {
    %c0_i32 = arith.constant 0 : i32
    %c0_i32_0 = arith.constant 0 : i32
    %c0_i32_1 = arith.constant 0 : i32
    return %c0_i32, %c0_i32_0 : i32, i32
  }
  func.func @transform_3(%arg0: i32) -> (i32, i32) {
    %c0_i32 = arith.constant 0 : i32
    %c0_i32_0 = arith.constant 0 : i32
    %c0_i32_1 = arith.constant 0 : i32
    return %c0_i32, %c0_i32_0 : i32, i32
  }
  func.func @transform_4(%arg0: i32) -> (i32, i32) {
    %c0_i32 = arith.constant 0 : i32
    %c0_i32_0 = arith.constant 0 : i32
    %c0_i32_1 = arith.constant 0 : i32
    return %c0_i32, %c0_i32_0 : i32, i32
  }
  func.func @transform_5(%arg0: i32) -> (i32, i32) {
    %c0_i32 = arith.constant 0 : i32
    %c0_i32_0 = arith.constant 0 : i32
    %c0_i32_1 = arith.constant 0 : i32
    return %c0_i32, %c0_i32_0 : i32, i32
  }
  func.func @transform_6(%arg0: i32) -> (i32, i32) {
    %c0_i32 = arith.constant 0 : i32
    %c0_i32_0 = arith.constant 0 : i32
    %c0_i32_1 = arith.constant 0 : i32
    return %c0_i32, %c0_i32_0 : i32, i32
  }
  func.func @transform_7(%arg0: i32) -> (i32, i32) {
    %c0_i32 = arith.constant 0 : i32
    %c0_i32_0 = arith.constant 0 : i32
    %c0_i32_1 = arith.constant 0 : i32
    return %c0_i32, %c0_i32_0 : i32, i32
  }
  func.func @transform_8(%arg0: i32) -> (i32, i32) {
    %c0_i32 = arith.constant 0 : i32
    %c0_i32_0 = arith.constant 0 : i32
    %c0_i32_1 = arith.constant 0 : i32
    return %c0_i32, %c0_i32_0 : i32, i32
  }
}

</mosaic_0001>

<llo_original>
// kernel: tpu_custom_call.1
$region0: #{tpu_custom_call.1}
  #allocation0 [shape = 'u32[]', space=smem, size = 0x4, offset = 0x4, fixed_abs, tag = 'smem constant byte address 0x4 - core index']
  #allocation1 [shape = 'u32[144,128]{1,0:T(1,128)}', space=vmem, size = 0x12000, scoped, tag = 'internal scratch']
  %s0 = inlined_call_operand.vmem [shape: s32[18,1], index: 0, kind: input, shape index: {}]
  %s1 = inlined_call_operand.vmem [shape: f32[128,32], index: 1, kind: input, shape index: {}]
  %s2 = inlined_call_operand.vmem [shape: f32[9,32], index: 2, kind: input, shape index: {}]
  %s3 = inlined_call_operand.vmem [shape: f32[2,32], index: 3, kind: input, shape index: {}]
  %s4 = inlined_call_operand.vmem [shape: f32[32,32], index: 4, kind: input, shape index: {}]
  %s5 = inlined_call_operand.vmem [shape: f32[1,32], index: 5, kind: input, shape index: {}]
  %s6 = inlined_call_operand.vmem [shape: f32[1,32], index: 6, kind: input, shape index: {}]
  %s7 = inlined_call_operand.vmem [shape: f32[1,32], index: 7, kind: input, shape index: {}]
  %s8 = inlined_call_operand.hbm [shape: f32[18,32], index: 8, kind: output, shape index: {}]
  %s9 = sld [smem:[#allocation0]]
  $region42: #{tpu_custom_call.1} parent=0
    _
  %s11 = ssub.s32 1, %s9
  %s12 = scalar_select 0, %s11, %s9
  $region1: #{tpu_custom_call.1} parent=0
    #allocation2 [shape = 'u8[12288]{0}', space=vmem, size = 0x3000, scoped, tag = 'output window, operand 0, single buffered']
    #allocation3 [shape = 's32[1]{0}', space=sflag, size = 0x4, scoped, tag = 'scoped memory for tpu_custom_call.1']
    %13 = vsyncpa [#allocation3], 0
    // Predicated region
    $region2: #{tpu_custom_call.1} parent=1 // pred_check
      _
    $region3: #{tpu_custom_call.1} parent=1 // pred_check_branch
      %15 = sbr.rel (0) target = $region5
    $region4: #{tpu_custom_call.1} parent=1 // pred_region
      _
    $region5: #{tpu_custom_call.1} parent=1 // pred_fallthru
      _
    // Predicated region
    $region6: #{tpu_custom_call.1} parent=1 // pred_check
      _
    $region7: #{tpu_custom_call.1} parent=1 // pred_check_branch
      %17 = sbr.rel (0) target = $region9
    $region8: #{tpu_custom_call.1} parent=1 // pred_region
      _
    $region9: #{tpu_custom_call.1} parent=1 // pred_fallthru
      _
    // Predicated region
    $region10: #{tpu_custom_call.1} parent=1 // pred_check
      _
    $region11: #{tpu_custom_call.1} parent=1 // pred_check_branch
      %19 = sbr.rel (0) target = $region13
    $region12: #{tpu_custom_call.1} parent=1 // pred_region
      _
    $region13: #{tpu_custom_call.1} parent=1 // pred_fallthru
      _
    // Predicated region
    $region14: #{tpu_custom_call.1} parent=1 // pred_check
      _
    $region15: #{tpu_custom_call.1} parent=1 // pred_check_branch
      %21 = sbr.rel (0) target = $region17
    $region16: #{tpu_custom_call.1} parent=1 // pred_region
      _
    $region17: #{tpu_custom_call.1} parent=1 // pred_fallthru
      _
    // Predicated region
    $region18: #{tpu_custom_call.1} parent=1 // pred_check
      _
    $region19: #{tpu_custom_call.1} parent=1 // pred_check_branch
      %23 = sbr.rel (0) target = $region21
    $region20: #{tpu_custom_call.1} parent=1 // pred_region
      _
    $region21: #{tpu_custom_call.1} parent=1 // pred_fallthru
      _
    // Predicated region
    $region22: #{tpu_custom_call.1} parent=1 // pred_check
      _
    $region23: #{tpu_custom_call.1} parent=1 // pred_check_branch
      %25 = sbr.rel (0) target = $region25
    $region24: #{tpu_custom_call.1} parent=1 // pred_region
      _
    $region25: #{tpu_custom_call.1} parent=1 // pred_fallthru
      _
    // Predicated region
    $region26: #{tpu_custom_call.1} parent=1 // pred_check
      _
    $region27: #{tpu_custom_call.1} parent=1 // pred_check_branch
      %27 = sbr.rel (0) target = $region29
    $region28: #{tpu_custom_call.1} parent=1 // pred_region
      _
    $region29: #{tpu_custom_call.1} parent=1 // pred_fallthru
      _
    // Predicated region
    $region30: #{tpu_custom_call.1} parent=1 // pred_check
      _
    $region31: #{tpu_custom_call.1} parent=1 // pred_check_branch
      %29 = sbr.rel (0) target = $region33
    $region32: #{tpu_custom_call.1} parent=1 // pred_region
      _
    $region33: #{tpu_custom_call.1} parent=1 // pred_fallthru
      _
    %v30 = vld [vmem:[%s0] sm:$0xff]
    %v31 = vld [vmem:[%s0 + $0x8] sm:$0xff]
    %v32 = vld [vmem:[%s0 + $0x10] sm:$0x3]
    %v33 = vlaneseq
    %v34 = vand.u32 %v33, 127
    %35 = vset.pattern.permute.xlu0 0
    %36 = vperm.xlu0 %35, %v30
    %v37 = vpop.permute.xlu0 %36
    %38 = vset.pattern.permute.xlu0 0
    %39 = vperm.xlu0 %38, %v31
    %v40 = vpop.permute.xlu0 %39
    %41 = vset.pattern.permute.xlu0 0
    %42 = vperm.xlu0 %41, %v32
    %v43 = vpop.permute.xlu0 %42
    %vm44 = vcmp.eq.s32.totalorder %v34, %v37
    %vm45 = vcmp.eq.s32.totalorder %v34, %v40
    %vm46 = vcmp.eq.s32.totalorder %v34, %v43
    %v47 = vsel %vm44, 1, 0
    %v48 = vsel %vm45, 1, 0
    %v49 = vsel %vm46, 1, 0
    %v50 = vcvt.s32.f32 %v47
    %v51 = vcvt.s32.f32 %v48
    %v52 = vcvt.s32.f32 %v49
    %v53 = vld [vmem:[%s1] sm:$0xff]
    %v54 = vld [vmem:[%s1 + $0x8] sm:$0xff]
    %v55 = vld [vmem:[%s1 + $0x10] sm:$0xff]
    %v56 = vld [vmem:[%s1 + $0x18] sm:$0xff]
    %v57 = vld [vmem:[%s1 + $0x20] sm:$0xff]
    %v58 = vld [vmem:[%s1 + $0x28] sm:$0xff]
    %v59 = vld [vmem:[%s1 + $0x30] sm:$0xff]
    %v60 = vld [vmem:[%s1 + $0x38] sm:$0xff]
    %v61 = vld [vmem:[%s1 + $0x40] sm:$0xff]
    %v62 = vld [vmem:[%s1 + $0x48] sm:$0xff]
    %v63 = vld [vmem:[%s1 + $0x50] sm:$0xff]
    %v64 = vld [vmem:[%s1 + $0x58] sm:$0xff]
    %v65 = vld [vmem:[%s1 + $0x60] sm:$0xff]
    %v66 = vld [vmem:[%s1 + $0x68] sm:$0xff]
    %v67 = vld [vmem:[%s1 + $0x70] sm:$0xff]
    %v68 = vld [vmem:[%s1 + $0x78] sm:$0xff]
    %v69 = vlaneseq
    %v70 = vshrl.u32 %v69, 7
    %v71 = vadd.s32 %v70, 8
    %v72 = vadd.s32 %v70, 16
    %vm73 = vcmp.ge.s32.totalorder %v70, 9
    %vm74 = vcmp.ge.s32.totalorder %v71, 9
    %vm75 = vcmp.ge.s32.totalorder %v72, 9
    %v76 = vsub.s32 %v70, 9
    %v77 = vsub.s32 %v71, 9
    %v78 = vsub.s32 %v72, 9
    %v79 = vsel %vm73, %v76, %v70
    %v80 = vsel %vm74, %v77, %v71
    %v81 = vsel %vm75, %v78, %v72
    %vm82 = vcmp.eq.s32.totalorder %v34, %v79
    %vm83 = vcmp.eq.s32.totalorder %v34, %v80
    %vm84 = vcmp.eq.s32.totalorder %v34, %v81
    %v85 = vsel %vm82, 1, 0
    %v86 = vsel %vm83, 1, 0
    %v87 = vsel %vm84, 1, 0
    %v88 = vcvt.s32.f32 %v85
    %v89 = vcvt.s32.f32 %v86
    %v90 = vcvt.s32.f32 %v87
    %v91 = vld [vmem:[%s2] sm:$0xff]
    %v92 = vld [vmem:[%s2 + $0x8] sm:$0x1]
    %vm93 = vcmask 72704
    %v95 = vsel %vm93, %v88, 0
    %v98 = vsel %vm93, %v89, 0
    %v101 = vsel %vm93, %v90, 0
    %vm103 = vcmask 1040384
    %v105 = vsel %vm103, %v92, 0
    %107 = vmatprep.subr.mxu0 0.0
    %108 = vmatpush1.msra.mxu0 0.0
    %109 = vmatprep.subr.mxu0 0.0
    %110 = vmatpush1.msra.mxu0 0.0
    %111 = vmatprep.subr.mxu0 0.0
    %112 = vmatpush1.msra.mxu0 0.0
    %113 = vmatprep.subr.mxu0 0.0
    %114 = vmatpush1.msra.mxu0 0.0
    %115 = vmatprep.subr.mxu0 0.0
    %116 = vmatpush1.msra.mxu0 0.0
    %117 = vmatprep.subr.mxu0 0.0
    %118 = vmatpush1.msra.mxu0 0.0
    %119 = vmatprep.subr.mxu0 0.0
    %120 = vmatpush1.msra.mxu0 0.0
    %121 = vmatprep.subr.mxu0 0.0
    %122 = vmatpush1.msra.mxu0 0.0
    %123 = vmatprep.subr.mxu0 0.0
    %124 = vmatpush1.msra.mxu0 0.0
    %125 = vmatprep.subr.mxu0 0.0
    %126 = vmatpush1.msra.mxu0 0.0
    %127 = vmatprep.subr.mxu0 0.0
    %128 = vmatpush1.msra.mxu0 0.0
    %129 = vmatprep.subr.mxu0 0.0
    %130 = vmatpush1.msra.mxu0 0.0
    %131 = vmatprep.subr.mxu0 0.0
    %132 = vmatpush1.msra.mxu0 0.0
    %133 = vmatprep.subr.mxu0 0.0
    %134 = vmatpush1.msra.mxu0 0.0
    %135 = vmatprep.subr.mxu0 0.0
    %136 = vmatpush1.msra.mxu0 %v105
    %137 = vmatprep.subr.mxu0 0.0
    %138 = vmatpush1.msra.mxu0 %v91
    %139 = vmatprep.subr.mxu0 0.0
    %140 = vmatpush2.msra.mxu0 0.0
    %141 = vmatprep.subr.mxu0 0.0
    %142 = vmatpush2.msra.mxu0 0.0
    %143 = vmatprep.subr.mxu0 0.0
    %144 = vmatpush2.msra.mxu0 0.0
    %145 = vmatprep.subr.mxu0 0.0
    %146 = vmatpush2.msra.mxu0 0.0
    %147 = vmatprep.subr.mxu0 0.0
    %148 = vmatpush2.msra.mxu0 0.0
    %149 = vmatprep.subr.mxu0 0.0
    %150 = vmatpush2.msra.mxu0 0.0
    %151 = vmatprep.subr.mxu0 0.0
    %152 = vmatpush2.msra.mxu0 0.0
    %153 = vmatprep.subr.mxu0 0.0
    %154 = vmatpush2.msra.mxu0 0.0
    %155 = vmatprep.subr.mxu0 0.0
    %156 = vmatpush2.msra.mxu0 0.0
    %157 = vmatprep.subr.mxu0 0.0
    %158 = vmatpush2.msra.mxu0 0.0
    %159 = vmatprep.subr.mxu0 0.0
    %160 = vmatpush2.msra.mxu0 0.0
    %161 = vmatprep.subr.mxu0 0.0
    %162 = vmatpush2.msra.mxu0 0.0
    %163 = vmatprep.subr.mxu0 0.0
    %164 = vmatpush2.msra.mxu0 0.0
    %165 = vmatprep.subr.mxu0 0.0
    %166 = vmatpush2.msra.mxu0 0.0
    %167 = vmatprep.subr.mxu0 0.0
    %168 = vmatpush2.msra.mxu0 0.0
    %169 = vmatprep.subr.mxu0 0.0
    %170 = vmatpush2.msra.mxu0 0.0
    %171 = vmatprep.mubr.f32.mxu0 0.0
    %172 = vmatmul.mubr.f32.gmra.mxu0 %v95
    %v173 = vpop.f32.mrf.mxu0
    %v174 = vadd.f32 0.0, %v173
    %v175 = vpop.f32.mrf.mxu0
    %176 = vmatprep.mubr.f32.mxu0 0.0
    %177 = vmatmul.mubr.f32.gmra.mxu0 %v98
    %v178 = vpop.f32.mrf.mxu0
    %v179 = vadd.f32 0.0, %v178
    %v180 = vpop.f32.mrf.mxu0
    %181 = vmatprep.mubr.f32.mxu0 0.0
    %182 = vmatmul.mubr.f32.gmra.mxu0 %v101
    %v183 = vpop.f32.mrf.mxu0
    %v184 = vadd.f32 0.0, %v183
    %v185 = vpop.f32.mrf.mxu0
    %186 = vdwg.mxu0
    %187 = vmatprep.subr.mxu0 0.0
    %188 = vmatpush1.msra.mxu0 %v68
    %189 = vmatprep.subr.mxu0 0.0
    %190 = vmatpush1.msra.mxu0 %v67
    %191 = vmatprep.subr.mxu0 0.0
    %192 = vmatpush1.msra.mxu0 %v66
    %193 = vmatprep.subr.mxu0 0.0
    %194 = vmatpush1.msra.mxu0 %v65
    %195 = vmatprep.subr.mxu0 0.0
    %196 = vmatpush1.msra.mxu0 %v64
    %197 = vmatprep.subr.mxu0 0.0
    %198 = vmatpush1.msra.mxu0 %v63
    %199 = vmatprep.subr.mxu0 0.0
    %200 = vmatpush1.msra.mxu0 %v62
    %201 = vmatprep.subr.mxu0 0.0
    %202 = vmatpush1.msra.mxu0 %v61
    %203 = vmatprep.subr.mxu0 0.0
    %204 = vmatpush1.msra.mxu0 %v60
    %205 = vmatprep.subr.mxu0 0.0
    %206 = vmatpush1.msra.mxu0 %v59
    %207 = vmatprep.subr.mxu0 0.0
    %208 = vmatpush1.msra.mxu0 %v58
    %209 = vmatprep.subr.mxu0 0.0
    %210 = vmatpush1.msra.mxu0 %v57
    %211 = vmatprep.subr.mxu0 0.0
    %212 = vmatpush1.msra.mxu0 %v56
    %213 = vmatprep.subr.mxu0 0.0
    %214 = vmatpush1.msra.mxu0 %v55
    %215 = vmatprep.subr.mxu0 0.0
    %216 = vmatpush1.msra.mxu0 %v54
    %217 = vmatprep.subr.mxu0 0.0
    %218 = vmatpush1.msra.mxu0 %v53
    %219 = vmatprep.subr.mxu0 0.0
    %220 = vmatpush2.msra.mxu0 0.0
    %221 = vmatprep.subr.mxu0 0.0
    %222 = vmatpush2.msra.mxu0 0.0
    %223 = vmatprep.subr.mxu0 0.0
    %224 = vmatpush2.msra.mxu0 0.0
    %225 = vmatprep.subr.mxu0 0.0
    %226 = vmatpush2.msra.mxu0 0.0
    %227 = vmatprep.subr.mxu0 0.0
    %228 = vmatpush2.msra.mxu0 0.0
    %229 = vmatprep.subr.mxu0 0.0
    %230 = vmatpush2.msra.mxu0 0.0
    %231 = vmatprep.subr.mxu0 0.0
    %232 = vmatpush2.msra.mxu0 0.0
    %233 = vmatprep.subr.mxu0 0.0
    %234 = vmatpush2.msra.mxu0 0.0
    %235 = vmatprep.subr.mxu0 0.0
    %236 = vmatpush2.msra.mxu0 0.0
    %237 = vmatprep.subr.mxu0 0.0
    %238 = vmatpush2.msra.mxu0 0.0
    %239 = vmatprep.subr.mxu0 0.0
    %240 = vmatpush2.msra.mxu0 0.0
    %241 = vmatprep.subr.mxu0 0.0
    %242 = vmatpush2.msra.mxu0 0.0
    %243 = vmatprep.subr.mxu0 0.0
    %244 = vmatpush2.msra.mxu0 0.0
    %245 = vmatprep.subr.mxu0 0.0
    %246 = vmatpush2.msra.mxu0 0.0
    %247 = vmatprep.subr.mxu0 0.0
    %248 = vmatpush2.msra.mxu0 0.0
    %249 = vmatprep.subr.mxu0 0.0
    %250 = vmatpush2.msra.mxu0 0.0
    %251 = vmatprep.mubr.f32.mxu0 0.0
    %252 = vmatmul.mubr.f32.gmra.mxu0 %v50
    %v253 = vpop.f32.mrf.mxu0
    %v254 = vadd.f32 %v174, %v253
    %v255 = vpop.f32.mrf.mxu0
    %256 = vmatprep.mubr.f32.mxu0 0.0
    %257 = vmatmul.mubr.f32.gmra.mxu0 %v51
    %v258 = vpop.f32.mrf.mxu0
    %v259 = vadd.f32 %v179, %v258
    %v260 = vpop.f32.mrf.mxu0
    %261 = vmatprep.mubr.f32.mxu0 0.0
    %262 = vmatmul.mubr.f32.gmra.mxu0 %v52
    %v263 = vpop.f32.mrf.mxu0
    %v264 = vadd.f32 %v184, %v263
    %v265 = vpop.f32.mrf.mxu0
    %266 = vdwg.mxu0
    %vm267 = vcmp.eq.s32.totalorder %v30, 0
    %vm268 = vcmp.eq.s32.totalorder %v31, 0
    %vm269 = vcmp.eq.s32.totalorder %v32, 0
    %v270 = vld [vmem:[%s3] sm:$0x1]
    %v271 = vld [vmem:[%s3 + $0x1] sm:$0x1]
    %v272 = vsel %vm267, 1, 0
    %v273 = vsel %vm268, 1, 0
    %v274 = vsel %vm269, 1, 0
    %275 = vset.pattern.permute.xlu0 0
    %276 = vperm.xlu0 %275, %v272
    %v277 = vpop.permute.xlu0 %276
    %278 = vset.pattern.permute.xlu0 0
    %279 = vperm.xlu0 %278, %v273
    %v280 = vpop.permute.xlu0 %279
    %281 = vset.pattern.permute.xlu0 0
    %282 = vperm.xlu0 %281, %v274
    %v283 = vpop.permute.xlu0 %282
    %vm284 = vcmp.eq.s32.totalorder %v277, 1
    %vm285 = vcmp.eq.s32.totalorder %v280, 1
    %vm286 = vcmp.eq.s32.totalorder %v283, 1
    %v287 = vlaneseq
    %v288 = vshrl.u32 %v287, 7
    %v289 = vsub.s32 0, %v288
    %v290 = vrot.slane %v270, %v289
    %v291 = vlaneseq
    %v292 = vshrl.u32 %v291, 7
    %v293 = vsub.s32 0, %v292
    %v294 = vrot.slane %v271, %v293
    %v295 = vsel %vm284, %v290, %v294
    %v296 = vsel %vm285, %v290, %v294
    %v297 = vsel %vm286, %v290, %v294
    %v298 = vadd.f32 %v254, %v295
    %v299 = vadd.f32 %v259, %v296
    %v300 = vadd.f32 %v264, %v297
    %v301 = vld [vmem:[%s4] sm:$0xff]
    %v302 = vld [vmem:[%s4 + $0x8] sm:$0xff]
    %v303 = vld [vmem:[%s4 + $0x10] sm:$0xff]
    %v304 = vld [vmem:[%s4 + $0x18] sm:$0xff]
    %v305 = vld [vmem:[%s5] sm:$0x1]
    %v307 = vlaneseq
    %v308 = vshrl.u32 %v307, 7
    %v309 = vsub.s32 0, %v308
    %v310 = vrot.slane %v305, %v309
    %vm312 = vcmask 261120
    %v314 = vsel %vm312, %v298, 0
    %v317 = vsel %vm312, %v299, 0
    %v320 = vsel %vm312, %v300, 0
    %322 = vmatprep.subr.mxu0 0.0
    %323 = vmatpush1.msra.mxu0 0.0
    %324 = vmatprep.subr.mxu0 0.0
    %325 = vmatpush1.msra.mxu0 0.0
    %326 = vmatprep.subr.mxu0 0.0
    %327 = vmatpush1.msra.mxu0 0.0
    %328 = vmatprep.subr.mxu0 0.0
    %329 = vmatpush1.msra.mxu0 0.0
    %330 = vmatprep.subr.mxu0 0.0
    %331 = vmatpush1.msra.mxu0 0.0
    %332 = vmatprep.subr.mxu0 0.0
    %333 = vmatpush1.msra.mxu0 0.0
    %334 = vmatprep.subr.mxu0 0.0
    %335 = vmatpush1.msra.mxu0 0.0
    %336 = vmatprep.subr.mxu0 0.0
    %337 = vmatpush1.msra.mxu0 0.0
    %338 = vmatprep.subr.mxu0 0.0
    %339 = vmatpush1.msra.mxu0 0.0
    %340 = vmatprep.subr.mxu0 0.0
    %341 = vmatpush1.msra.mxu0 0.0
    %342 = vmatprep.subr.mxu0 0.0
    %343 = vmatpush1.msra.mxu0 0.0
    %344 = vmatprep.subr.mxu0 0.0
    %345 = vmatpush1.msra.mxu0 0.0
    %346 = vmatprep.subr.mxu0 0.0
    %347 = vmatpush1.msra.mxu0 %v304
    %348 = vmatprep.subr.mxu0 0.0
    %349 = vmatpush1.msra.mxu0 %v303
    %350 = vmatprep.subr.mxu0 0.0
    %351 = vmatpush1.msra.mxu0 %v302
    %352 = vmatprep.subr.mxu0 0.0
    %353 = vmatpush1.msra.mxu0 %v301
    %354 = vmatprep.subr.mxu0 0.0
    %355 = vmatpush2.msra.mxu0 0.0
    %356 = vmatprep.subr.mxu0 0.0
    %357 = vmatpush2.msra.mxu0 0.0
    %358 = vmatprep.subr.mxu0 0.0
    %359 = vmatpush2.msra.mxu0 0.0
    %360 = vmatprep.subr.mxu0 0.0
    %361 = vmatpush2.msra.mxu0 0.0
    %362 = vmatprep.subr.mxu0 0.0
    %363 = vmatpush2.msra.mxu0 0.0
    %364 = vmatprep.subr.mxu0 0.0
    %365 = vmatpush2.msra.mxu0 0.0
    %366 = vmatprep.subr.mxu0 0.0
    %367 = vmatpush2.msra.mxu0 0.0
    %368 = vmatprep.subr.mxu0 0.0
    %369 = vmatpush2.msra.mxu0 0.0
    %370 = vmatprep.subr.mxu0 0.0
    %371 = vmatpush2.msra.mxu0 0.0
    %372 = vmatprep.subr.mxu0 0.0
    %373 = vmatpush2.msra.mxu0 0.0
    %374 = vmatprep.subr.mxu0 0.0
    %375 = vmatpush2.msra.mxu0 0.0
    %376 = vmatprep.subr.mxu0 0.0
    %377 = vmatpush2.msra.mxu0 0.0
    %378 = vmatprep.subr.mxu0 0.0
    %379 = vmatpush2.msra.mxu0 0.0
    %380 = vmatprep.subr.mxu0 0.0
    %381 = vmatpush2.msra.mxu0 0.0
    %382 = vmatprep.subr.mxu0 0.0
    %383 = vmatpush2.msra.mxu0 0.0
    %384 = vmatprep.subr.mxu0 0.0
    %385 = vmatpush2.msra.mxu0 0.0
    %386 = vmatprep.mubr.f32.mxu0 0.0
    %387 = vmatmul.mubr.f32.gmra.mxu0 %v314
    %v388 = vpop.f32.mrf.mxu0
    %v389 = vadd.f32 %v310, %v388
    %v390 = vpop.f32.mrf.mxu0
    %391 = vmatprep.mubr.f32.mxu0 0.0
    %392 = vmatmul.mubr.f32.gmra.mxu0 %v317
    %v393 = vpop.f32.mrf.mxu0
    %v394 = vadd.f32 %v310, %v393
    %v395 = vpop.f32.mrf.mxu0
    %396 = vmatprep.mubr.f32.mxu0 0.0
    %397 = vmatmul.mubr.f32.gmra.mxu0 %v320
    %v398 = vpop.f32.mrf.mxu0
    %v399 = vadd.f32 %v310, %v398
    %v400 = vpop.f32.mrf.mxu0
    %401 = vdwg.mxu0
    %v402 = vsel %vm312, %v389, 0.0
    %403 = vadd.xlane.f32.xlu0 %v402
    %v404 = vpop.xlane.xlu0 %403
    %v405 = vsel %vm312, %v394, 0.0
    %406 = vadd.xlane.f32.xlu0 %v405
    %v407 = vpop.xlane.xlu0 %406
    %vm408 = vcmask 254976
    %v409 = vsel %vm408, %v399, 0.0
    %410 = vadd.xlane.f32.xlu0 %v409
    %v411 = vpop.xlane.xlu0 %410
    %v412 = vrcp.pop 32.0
    %v413 = vmul.f32 %v404, %v412
    %v414 = vmul.f32 %v407, %v412
    %v415 = vmul.f32 %v411, %v412
    %v416 = vsub.f32 %v389, %v413
    %v417 = vsub.f32 %v394, %v414
    %v418 = vsub.f32 %v399, %v415
    %v419 = vmul.f32 %v416, %v416
    %v420 = vmul.f32 %v417, %v417
    %v421 = vmul.f32 %v418, %v418
    %v422 = vsel %vm312, %v419, 0.0
    %423 = vadd.xlane.f32.xlu0 %v422
    %v424 = vpop.xlane.xlu0 %423
    %v425 = vsel %vm312, %v420, 0.0
    %426 = vadd.xlane.f32.xlu0 %v425
    %v427 = vpop.xlane.xlu0 %426
    %v428 = vsel %vm408, %v421, 0.0
    %429 = vadd.xlane.f32.xlu0 %v428
    %v430 = vpop.xlane.xlu0 %429
    %v431 = vmul.f32 %v424, %v412
    %v432 = vmul.f32 %v427, %v412
    %v433 = vmul.f32 %v430, %v412
    %v434 = vadd.f32 %v431, 1e-12
    %v435 = vadd.f32 %v432, 1e-12
    %v436 = vadd.f32 %v433, 1e-12
    %v437 = vrsqrt.pop %v434
    %v438 = vrsqrt.pop %v435
    %v439 = vrsqrt.pop %v436
    %v440 = vmul.f32 %v416, %v437
    %v441 = vmul.f32 %v417, %v438
    %v442 = vmul.f32 %v418, %v439
    %v443 = vld [vmem:[%s6] sm:$0x1]
    %v445 = vlaneseq
    %v446 = vshrl.u32 %v445, 7
    %v447 = vsub.s32 0, %v446
    %v448 = vrot.slane %v443, %v447
    %v450 = vmul.f32 %v440, %v448
    %v451 = vmul.f32 %v441, %v448
    %v452 = vmul.f32 %v442, %v448
    %v453 = vld [vmem:[%s7] sm:$0x1]
    %v455 = vlaneseq
    %v456 = vshrl.u32 %v455, 7
    %v457 = vsub.s32 0, %v456
    %v458 = vrot.slane %v453, %v457
    %v460 = vadd.f32 %v450, %v458
    %v461 = vadd.f32 %v451, %v458
    %v462 = vadd.f32 %v452, %v458
    %463 = vst.msk [vmem:[#allocation2] sm:$0xff] %vm312, %v460
    %464 = vst.msk [vmem:[#allocation2 + $0x8] sm:$0xff] %vm312, %v461
    %465 = vst.msk [vmem:[#allocation2 + $0x10] sm:$0x3] %vm408, %v462
    // Predicated region
    $region34: #{tpu_custom_call.1} parent=1 // pred_check
      _
    $region35: #{tpu_custom_call.1} parent=1 // pred_check_branch
      %467 = sbr.rel (0) target = $region37
    $region36: #{tpu_custom_call.1} parent=1 // pred_region
      %s469 = ssub.s32 384, 384
      %470 = vsyncadd [#allocation3], %s469
      %s471 = sshll.u32 [#allocation2], 4
      %s472 = int_to_ptr.vmem [resolvable:$true] %s471
      %477 = dma.vmem_to_hbm [thread:$0]  %s472, 384, %s8, [#allocation3], 128, 128, 8
    $region37: #{tpu_custom_call.1} parent=1 // pred_fallthru
      _
    // Predicated region
    $region38: #{tpu_custom_call.1} parent=1 // pred_check
      _
    $region39: #{tpu_custom_call.1} parent=1 // pred_check_branch
      %479 = sbr.rel (0) target = $region41
    $region40: #{tpu_custom_call.1} parent=1 // pred_region
      %480 = dma.done [#allocation3], 384
    $region41: #{tpu_custom_call.1} parent=1 // pred_fallthru
      _
    %481 = vsyncpa [#allocation3], 1

</llo_original>
